<compile_context>
chip_gen: v7x
topology: tpu7x:2x2x1
jax: 0.10.0
libtpu: 0.0.40
codegen_flags: <defaults>
</compile_context>

<pallas_src>
import functools

import jax
import jax.numpy as jnp
from jax.experimental import pallas as pl
from jax.experimental.pallas import tpu as pltpu

INPUT_SIZE = 1024
HIDDEN_SIZE = 256
OUTPUT_SIZE = 1
DEFAULT_BLOCK_B = 512    # batch tile (multiple of 128 when B is large)


def _ffnn_kernel(x_ref, w1_ref, b1_ref, w2_ref, b2_ref, o_ref):
    # Cast activations f32 -> bf16 in-kernel (VPU, hidden under the x DMA).
    x_bf = x_ref[...].astype(jnp.bfloat16)
    # fc1 on the MXU: bf16 x bf16 -> f32 accumulation.
    h = jnp.dot(x_bf, w1_ref[...], preferred_element_type=jnp.float32)
    # bias + ReLU in f32 on the VPU.
    h = jnp.maximum(h + b1_ref[...], 0.0)
    # fc2 (output width 1): lane-wise multiply + cross-lane reduce on VPU/XLU
    # instead of an N=1 MXU matmul; b2 is a scalar read from SMEM.
    out = jnp.sum(h * w2_ref[...], axis=-1, keepdims=True) + b2_ref[0]
    o_ref[...] = out.astype(o_ref.dtype)


@functools.partial(jax.jit, static_argnames=("block_b",))
def feed_forward_nn(x, w1, b1, w2, b2, *, block_b=DEFAULT_BLOCK_B):
    """x: (B, INPUT_SIZE); w1: (INPUT_SIZE, HIDDEN); b1: (HIDDEN,);
    w2: (HIDDEN, OUTPUT); b2: (OUTPUT,).  Returns (B, OUTPUT) float32."""
    B = x.shape[0]

    x = x.astype(jnp.float32)                                 # kernel casts to bf16
    w1_bf = w1.astype(jnp.bfloat16)                           # resident weight (0.5 MiB)
    b1_row = b1.reshape(1, HIDDEN_SIZE).astype(jnp.float32)
    w2_row = w2.reshape(1, HIDDEN_SIZE).astype(jnp.float32)   # (HIDDEN, 1) -> (1, HIDDEN)
    b2_s = b2.reshape(1).astype(jnp.float32)                  # scalar, lives in SMEM

    # Pad batch to a sublane multiple; pick a batch tile <= block_b.
    B_pad = max(8, pl.cdiv(B, 8) * 8)
    if B_pad != B:
        x = jnp.pad(x, ((0, B_pad - B), (0, 0)))
    TB = min(block_b, B_pad)
    grid = (pl.cdiv(B_pad, TB),)

    out_full = pl.pallas_call(
        _ffnn_kernel,
        out_shape=jax.ShapeDtypeStruct((B_pad, OUTPUT_SIZE), jnp.float32),
        grid=grid,
        in_specs=[
            # Activations: tiled over the batch (double-buffered by Pallas).
            pl.BlockSpec((TB, INPUT_SIZE), lambda i: (i, 0)),
            # Weights / biases: constant block index -> VMEM-resident, no re-DMA.
            pl.BlockSpec((INPUT_SIZE, HIDDEN_SIZE), lambda i: (0, 0)),
            pl.BlockSpec((1, HIDDEN_SIZE), lambda i: (0, 0)),
            pl.BlockSpec((1, HIDDEN_SIZE), lambda i: (0, 0)),
            # Scalar fc2 bias in SMEM.
            pl.BlockSpec(memory_space=pltpu.MemorySpace.SMEM),
        ],
        # Narrow (TB, 1) output block: last dim equals the full array dim, so
        # it is a legal block shape; HBM writeback is 4 B/row instead of 512.
        out_specs=pl.BlockSpec((TB, OUTPUT_SIZE), lambda i: (i, 0)),
        compiler_params=pltpu.CompilerParams(
            dimension_semantics=("parallel",),
        ),
    )(x, w1_bf, b1_row, w2_row, b2_s)

    return out_full[:B]


def init_params(key):
    """Deterministic init mimicking PyTorch nn.Linear (uniform +/- 1/sqrt(fan_in)).
    Weights stored as (in_features, out_features) = transpose of PyTorch layout."""
    k1, k2, k3, k4 = jax.random.split(key, 4)
    bound1 = 1.0 / jnp.sqrt(float(INPUT_SIZE))
    bound2 = 1.0 / jnp.sqrt(float(HIDDEN_SIZE))
    w1 = jax.random.uniform(k1, (INPUT_SIZE, HIDDEN_SIZE), jnp.float32,
                            minval=-bound1, maxval=bound1)
    b1 = jax.random.uniform(k2, (HIDDEN_SIZE,), jnp.float32,
                            minval=-bound1, maxval=bound1)
    w2 = jax.random.uniform(k3, (HIDDEN_SIZE, OUTPUT_SIZE), jnp.float32,
                            minval=-bound2, maxval=bound2)
    b2 = jax.random.uniform(k4, (OUTPUT_SIZE,), jnp.float32,
                            minval=-bound2, maxval=bound2)
    return w1, b1, w2, b2


if __name__ == "__main__":
    key = jax.random.PRNGKey(0)
    kx, kp = jax.random.split(key)

    batch = 8
    x = jax.random.normal(kx, (batch, INPUT_SIZE), dtype=jnp.float32)
    w1, b1, w2, b2 = init_params(kp)

    out = feed_forward_nn(x, w1, b1, w2, b2)
    out = jax.block_until_ready(out)
    assert out.shape == (batch, OUTPUT_SIZE)

    # Reference with matched numerics (bf16 matmul inputs, f32 accumulation).
    xb = x.astype(jnp.bfloat16)
    w1b = w1.astype(jnp.bfloat16)
    h_ref = jnp.maximum(
        jnp.dot(xb, w1b, preferred_element_type=jnp.float32) + b1, 0.0)
    ref_bf16 = h_ref @ w2 + b2
    assert jnp.allclose(out, ref_bf16, atol=5e-3, rtol=5e-3)

    # Loose check against the full-f32 PyTorch-equivalent forward.
    ref_f32 = jnp.maximum(x @ w1 + b1, 0.0) @ w2 + b2
    assert jnp.allclose(out, ref_f32, atol=5e-2, rtol=5e-2)

    print("KERNEL_OK")
</pallas_src>

<mosaic_0001>
module attributes {stable_mosaic.version = 11 : i64} {
  func.func @_ffnn_kernel(%arg0: i32, %arg1: memref<8x1024xf32, #tpu.memory_space<vmem>>, %arg2: memref<1024x256xbf16, #tpu.memory_space<vmem>>, %arg3: memref<1x256xf32, #tpu.memory_space<vmem>>, %arg4: memref<1x256xf32, #tpu.memory_space<vmem>>, %arg5: memref<1xf32, #tpu.memory_space<smem>>, %arg6: memref<8x1xf32, #tpu.memory_space<vmem>>) attributes {dimension_semantics = [#tpu.dimension_semantics<parallel>], iteration_bounds = array<i64: 1>, scalar_prefetch = 0 : i64, scratch_operands = 0 : i64, tpu.core_type = #tpu.core_type<tc>, window_params = [{transform_indices = @transform_0, window_bounds = array<i64: 8, 1024>}, {pipeline_mode = #tpu.pipeline_mode<synchronous>, transform_indices = @transform_1, window_bounds = array<i64: 1024, 256>}, {pipeline_mode = #tpu.pipeline_mode<synchronous>, transform_indices = @transform_2, window_bounds = array<i64: 1, 256>}, {pipeline_mode = #tpu.pipeline_mode<synchronous>, transform_indices = @transform_3, window_bounds = array<i64: 1, 256>}, {transform_indices = @transform_4, window_bounds = array<i64: 1>}, {transform_indices = @transform_5, window_bounds = array<i64: 8, 1>}]} {
    %c0 = arith.constant 0 : index
    %c0_0 = arith.constant 0 : index
    %0 = vector.load %arg1[%c0, %c0_0] : memref<8x1024xf32, #tpu.memory_space<vmem>>, vector<8x1024xf32>
    %1 = arith.truncf %0 : vector<8x1024xf32> to vector<8x1024xbf16>
    %c0_1 = arith.constant 0 : index
    %c0_2 = arith.constant 0 : index
    %2 = vector.load %arg2[%c0_1, %c0_2] : memref<1024x256xbf16, #tpu.memory_space<vmem>>, vector<1024x256xbf16>
    %cst = arith.constant dense<0.000000e+00> : vector<8x256xf32>
    %3 = tpu.matmul %1, %2, %cst {dimension_numbers = #tpu.dot_dimension_numbers<[1], [0], [0], [1], [0, 0, 1, 1], [], []>} : vector<8x1024xbf16>, vector<1024x256xbf16>, vector<8x256xf32> -> vector<8x256xf32>
    %c0_3 = arith.constant 0 : index
    %c0_4 = arith.constant 0 : index
    %4 = vector.load %arg3[%c0_3, %c0_4] : memref<1x256xf32, #tpu.memory_space<vmem>>, vector<1x256xf32>
    %5 = vector.broadcast %4 : vector<1x256xf32> to vector<8x256xf32>
    %6 = arith.addf %3, %5 : vector<8x256xf32>
    %cst_5 = arith.constant 0.000000e+00 : f32
    %7 = vector.broadcast %cst_5 : f32 to vector<8x256xf32>
    %8 = arith.maximumf %6, %7 : vector<8x256xf32>
    %c0_6 = arith.constant 0 : index
    %c0_7 = arith.constant 0 : index
    %9 = vector.load %arg4[%c0_6, %c0_7] : memref<1x256xf32, #tpu.memory_space<vmem>>, vector<1x256xf32>
    %10 = vector.broadcast %9 : vector<1x256xf32> to vector<8x256xf32>
    %11 = arith.mulf %8, %10 : vector<8x256xf32>
    %cst_8 = arith.constant dense<0.000000e+00> : vector<8xf32>
    %12 = vector.multi_reduction <add>, %11, %cst_8 [1] : vector<8x256xf32> to vector<8xf32>
    %13 = vector.shape_cast %12 : vector<8xf32> to vector<8x1xf32>
    %c0_9 = arith.constant 0 : index
    %14 = memref.load %arg5[%c0_9] : memref<1xf32, #tpu.memory_space<smem>>
    %15 = vector.broadcast %14 : f32 to vector<8x1xf32>
    %16 = arith.addf %13, %15 : vector<8x1xf32>
    %c0_10 = arith.constant 0 : index
    %c0_11 = arith.constant 0 : index
    %17 = vector.load %arg6[%c0_10, %c0_11] : memref<8x1xf32, #tpu.memory_space<vmem>>, vector<8x1xf32>
    tpu.vector_store %arg6[%c0_10, %c0_11], %16 {strides = array<i32>} : memref<8x1xf32, #tpu.memory_space<vmem>>, vector<8x1xf32>,
    return
  }
  func.func @transform_0(%arg0: i32) -> (i32, i32) {
    %c0_i32 = arith.constant 0 : i32
    %c0_i32_0 = arith.constant 0 : i32
    return %arg0, %c0_i32 : i32, i32
  }
  func.func @transform_1(%arg0: i32) -> (i32, i32) {
    %c0_i32 = arith.constant 0 : i32
    %c0_i32_0 = arith.constant 0 : i32
    %c0_i32_1 = arith.constant 0 : i32
    return %c0_i32, %c0_i32_0 : i32, i32
  }
  func.func @transform_2(%arg0: i32) -> (i32, i32) {
    %c0_i32 = arith.constant 0 : i32
    %c0_i32_0 = arith.constant 0 : i32
    %c0_i32_1 = arith.constant 0 : i32
    return %c0_i32, %c0_i32_0 : i32, i32
  }
  func.func @transform_3(%arg0: i32) -> (i32, i32) {
    %c0_i32 = arith.constant 0 : i32
    %c0_i32_0 = arith.constant 0 : i32
    %c0_i32_1 = arith.constant 0 : i32
    return %c0_i32, %c0_i32_0 : i32, i32
  }
  func.func @transform_4(%arg0: i32) -> i32 {
    %c0_i32 = arith.constant 0 : i32
    %c0_i32_0 = arith.constant 0 : i32
    return %c0_i32 : i32
  }
  func.func @transform_5(%arg0: i32) -> (i32, i32) {
    %c0_i32 = arith.constant 0 : i32
    %c0_i32_0 = arith.constant 0 : i32
    return %arg0, %c0_i32 : i32, i32
  }
}

</mosaic_0001>

<llo_original>
// kernel: feed_forward_nn.1
$region0: #{feed_forward_nn.1}
  #allocation0 [shape = 'u32[]', space=smem, size = 0x4, offset = 0x4, fixed_abs, tag = 'smem constant byte address 0x4 - core index']
  #allocation1 [shape = 'u32[144,128]{1,0:T(1,128)}', space=vmem, size = 0x12000, scoped, tag = 'internal scratch']
  #allocation2 [shape = 'f32[1]{0:T(128)S(6)}', space=smem, size = 0x200, scoped, tag = 'scoped memory for feed_forward_nn.1']
  %s0 = inlined_call_operand.vmem [shape: f32[8,1024], index: 0, kind: input, shape index: {}]
  %s1 = inlined_call_operand.vmem [shape: bf16[1024,256], index: 1, kind: input, shape index: {}]
  %s2 = inlined_call_operand.vmem [shape: f32[1,256], index: 2, kind: input, shape index: {}]
  %s3 = inlined_call_operand.vmem [shape: f32[1,256], index: 3, kind: input, shape index: {}]
  %s4 = inlined_call_operand.<no memory space> [shape: f32[1], index: 4, kind: input, shape index: {}]
  %s5 = inlined_call_operand.vmem [shape: f32[8,1], index: 5, kind: output, shape index: {}]
  %s6 = sld [smem:[#allocation0]]
  $region30: #{feed_forward_nn.1} parent=0
    _
  %s8 = ssub.s32 1, %s6
  %s9 = scalar_select 0, %s8, %s6
  %10 = sst [smem:[#allocation2]] %s4
  // Predicated region
  $region2: #{feed_forward_nn.1} parent=0 // pred_check
    _
  $region3: #{feed_forward_nn.1} parent=0 // pred_check_branch
    %12 = sbr.rel (0) target = $region5
  $region4: #{feed_forward_nn.1} parent=0 // pred_region
    _
  $region5: #{feed_forward_nn.1} parent=0 // pred_fallthru
    _
  // Predicated region
  $region6: #{feed_forward_nn.1} parent=0 // pred_check
    _
  $region7: #{feed_forward_nn.1} parent=0 // pred_check_branch
    %14 = sbr.rel (0) target = $region9
  $region8: #{feed_forward_nn.1} parent=0 // pred_region
    _
  $region9: #{feed_forward_nn.1} parent=0 // pred_fallthru
    _
  // Predicated region
  $region10: #{feed_forward_nn.1} parent=0 // pred_check
    _
  $region11: #{feed_forward_nn.1} parent=0 // pred_check_branch
    %16 = sbr.rel (0) target = $region13
  $region12: #{feed_forward_nn.1} parent=0 // pred_region
    _
  $region13: #{feed_forward_nn.1} parent=0 // pred_fallthru
    _
  // Predicated region
  $region14: #{feed_forward_nn.1} parent=0 // pred_check
    _
  $region15: #{feed_forward_nn.1} parent=0 // pred_check_branch
    %18 = sbr.rel (0) target = $region17
  $region16: #{feed_forward_nn.1} parent=0 // pred_region
    _
  $region17: #{feed_forward_nn.1} parent=0 // pred_fallthru
    _
  // Predicated region
  $region18: #{feed_forward_nn.1} parent=0 // pred_check
    _
  $region19: #{feed_forward_nn.1} parent=0 // pred_check_branch
    %20 = sbr.rel (0) target = $region21
  $region20: #{feed_forward_nn.1} parent=0 // pred_region
    _
  $region21: #{feed_forward_nn.1} parent=0 // pred_fallthru
    _
  %v21 = vld [vmem:[%s0] sm:$0xff]
  %v22 = vld [vmem:[%s0 + $0x8] sm:$0xff]
  %v23 = vld [vmem:[%s0 + $0x10] sm:$0xff]
  %v24 = vld [vmem:[%s0 + $0x18] sm:$0xff]
  %v25 = vld [vmem:[%s0 + $0x20] sm:$0xff]
  %v26 = vld [vmem:[%s0 + $0x28] sm:$0xff]
  %v27 = vld [vmem:[%s0 + $0x30] sm:$0xff]
  %v28 = vld [vmem:[%s0 + $0x38] sm:$0xff]
  %v29 = vpack.c.bf16 %v21, %v21
  %v30 = vpack.c.bf16 %v22, %v22
  %v31 = vpack.c.bf16 %v23, %v23
  %v32 = vpack.c.bf16 %v24, %v24
  %v33 = vpack.c.bf16 %v25, %v25
  %v34 = vpack.c.bf16 %v26, %v26
  %v35 = vpack.c.bf16 %v27, %v27
  %v36 = vpack.c.bf16 %v28, %v28
  %v37 = vld [vmem:[%s1] sm:$0xff]
  %v38 = vld [vmem:[%s1 + $0x8] sm:$0xff]
  %v39 = vld [vmem:[%s1 + $0x10] sm:$0xff]
  %v40 = vld [vmem:[%s1 + $0x18] sm:$0xff]
  %v41 = vld [vmem:[%s1 + $0x20] sm:$0xff]
  %v42 = vld [vmem:[%s1 + $0x28] sm:$0xff]
  %v43 = vld [vmem:[%s1 + $0x30] sm:$0xff]
  %v44 = vld [vmem:[%s1 + $0x38] sm:$0xff]
  %v45 = vld [vmem:[%s1 + $0x40] sm:$0xff]
  %v46 = vld [vmem:[%s1 + $0x48] sm:$0xff]
  %v47 = vld [vmem:[%s1 + $0x50] sm:$0xff]
  %v48 = vld [vmem:[%s1 + $0x58] sm:$0xff]
  %v49 = vld [vmem:[%s1 + $0x60] sm:$0xff]
  %v50 = vld [vmem:[%s1 + $0x68] sm:$0xff]
  %v51 = vld [vmem:[%s1 + $0x70] sm:$0xff]
  %v52 = vld [vmem:[%s1 + $0x78] sm:$0xff]
  %v53 = vld [vmem:[%s1 + $0x80] sm:$0xff]
  %v54 = vld [vmem:[%s1 + $0x88] sm:$0xff]
  %v55 = vld [vmem:[%s1 + $0x90] sm:$0xff]
  %v56 = vld [vmem:[%s1 + $0x98] sm:$0xff]
  %v57 = vld [vmem:[%s1 + $0xa0] sm:$0xff]
  %v58 = vld [vmem:[%s1 + $0xa8] sm:$0xff]
  %v59 = vld [vmem:[%s1 + $0xb0] sm:$0xff]
  %v60 = vld [vmem:[%s1 + $0xb8] sm:$0xff]
  %v61 = vld [vmem:[%s1 + $0xc0] sm:$0xff]
  %v62 = vld [vmem:[%s1 + $0xc8] sm:$0xff]
  %v63 = vld [vmem:[%s1 + $0xd0] sm:$0xff]
  %v64 = vld [vmem:[%s1 + $0xd8] sm:$0xff]
  %v65 = vld [vmem:[%s1 + $0xe0] sm:$0xff]
  %v66 = vld [vmem:[%s1 + $0xe8] sm:$0xff]
  %v67 = vld [vmem:[%s1 + $0xf0] sm:$0xff]
  %v68 = vld [vmem:[%s1 + $0xf8] sm:$0xff]
  %v69 = vld [vmem:[%s1 + $0x100] sm:$0xff]
  %v70 = vld [vmem:[%s1 + $0x108] sm:$0xff]
  %v71 = vld [vmem:[%s1 + $0x110] sm:$0xff]
  %v72 = vld [vmem:[%s1 + $0x118] sm:$0xff]
  %v73 = vld [vmem:[%s1 + $0x120] sm:$0xff]
  %v74 = vld [vmem:[%s1 + $0x128] sm:$0xff]
  %v75 = vld [vmem:[%s1 + $0x130] sm:$0xff]
  %v76 = vld [vmem:[%s1 + $0x138] sm:$0xff]
  %v77 = vld [vmem:[%s1 + $0x140] sm:$0xff]
  %v78 = vld [vmem:[%s1 + $0x148] sm:$0xff]
  %v79 = vld [vmem:[%s1 + $0x150] sm:$0xff]
  %v80 = vld [vmem:[%s1 + $0x158] sm:$0xff]
  %v81 = vld [vmem:[%s1 + $0x160] sm:$0xff]
  %v82 = vld [vmem:[%s1 + $0x168] sm:$0xff]
  %v83 = vld [vmem:[%s1 + $0x170] sm:$0xff]
  %v84 = vld [vmem:[%s1 + $0x178] sm:$0xff]
  %v85 = vld [vmem:[%s1 + $0x180] sm:$0xff]
  %v86 = vld [vmem:[%s1 + $0x188] sm:$0xff]
  %v87 = vld [vmem:[%s1 + $0x190] sm:$0xff]
  %v88 = vld [vmem:[%s1 + $0x198] sm:$0xff]
  %v89 = vld [vmem:[%s1 + $0x1a0] sm:$0xff]
  %v90 = vld [vmem:[%s1 + $0x1a8] sm:$0xff]
  %v91 = vld [vmem:[%s1 + $0x1b0] sm:$0xff]
  %v92 = vld [vmem:[%s1 + $0x1b8] sm:$0xff]
  %v93 = vld [vmem:[%s1 + $0x1c0] sm:$0xff]
  %v94 = vld [vmem:[%s1 + $0x1c8] sm:$0xff]
  %v95 = vld [vmem:[%s1 + $0x1d0] sm:$0xff]
  %v96 = vld [vmem:[%s1 + $0x1d8] sm:$0xff]
  %v97 = vld [vmem:[%s1 + $0x1e0] sm:$0xff]
  %v98 = vld [vmem:[%s1 + $0x1e8] sm:$0xff]
  %v99 = vld [vmem:[%s1 + $0x1f0] sm:$0xff]
  %v100 = vld [vmem:[%s1 + $0x1f8] sm:$0xff]
  %v101 = vld [vmem:[%s1 + $0x200] sm:$0xff]
  %v102 = vld [vmem:[%s1 + $0x208] sm:$0xff]
  %v103 = vld [vmem:[%s1 + $0x210] sm:$0xff]
  %v104 = vld [vmem:[%s1 + $0x218] sm:$0xff]
  %v105 = vld [vmem:[%s1 + $0x220] sm:$0xff]
  %v106 = vld [vmem:[%s1 + $0x228] sm:$0xff]
  %v107 = vld [vmem:[%s1 + $0x230] sm:$0xff]
  %v108 = vld [vmem:[%s1 + $0x238] sm:$0xff]
  %v109 = vld [vmem:[%s1 + $0x240] sm:$0xff]
  %v110 = vld [vmem:[%s1 + $0x248] sm:$0xff]
  %v111 = vld [vmem:[%s1 + $0x250] sm:$0xff]
  %v112 = vld [vmem:[%s1 + $0x258] sm:$0xff]
  %v113 = vld [vmem:[%s1 + $0x260] sm:$0xff]
  %v114 = vld [vmem:[%s1 + $0x268] sm:$0xff]
  %v115 = vld [vmem:[%s1 + $0x270] sm:$0xff]
  %v116 = vld [vmem:[%s1 + $0x278] sm:$0xff]
  %v117 = vld [vmem:[%s1 + $0x280] sm:$0xff]
  %v118 = vld [vmem:[%s1 + $0x288] sm:$0xff]
  %v119 = vld [vmem:[%s1 + $0x290] sm:$0xff]
  %v120 = vld [vmem:[%s1 + $0x298] sm:$0xff]
  %v121 = vld [vmem:[%s1 + $0x2a0] sm:$0xff]
  %v122 = vld [vmem:[%s1 + $0x2a8] sm:$0xff]
  %v123 = vld [vmem:[%s1 + $0x2b0] sm:$0xff]
  %v124 = vld [vmem:[%s1 + $0x2b8] sm:$0xff]
  %v125 = vld [vmem:[%s1 + $0x2c0] sm:$0xff]
  %v126 = vld [vmem:[%s1 + $0x2c8] sm:$0xff]
  %v127 = vld [vmem:[%s1 + $0x2d0] sm:$0xff]
  %v128 = vld [vmem:[%s1 + $0x2d8] sm:$0xff]
  %v129 = vld [vmem:[%s1 + $0x2e0] sm:$0xff]
  %v130 = vld [vmem:[%s1 + $0x2e8] sm:$0xff]
  %v131 = vld [vmem:[%s1 + $0x2f0] sm:$0xff]
  %v132 = vld [vmem:[%s1 + $0x2f8] sm:$0xff]
  %v133 = vld [vmem:[%s1 + $0x300] sm:$0xff]
  %v134 = vld [vmem:[%s1 + $0x308] sm:$0xff]
  %v135 = vld [vmem:[%s1 + $0x310] sm:$0xff]
  %v136 = vld [vmem:[%s1 + $0x318] sm:$0xff]
  %v137 = vld [vmem:[%s1 + $0x320] sm:$0xff]
  %v138 = vld [vmem:[%s1 + $0x328] sm:$0xff]
  %v139 = vld [vmem:[%s1 + $0x330] sm:$0xff]
  %v140 = vld [vmem:[%s1 + $0x338] sm:$0xff]
  %v141 = vld [vmem:[%s1 + $0x340] sm:$0xff]
  %v142 = vld [vmem:[%s1 + $0x348] sm:$0xff]
  %v143 = vld [vmem:[%s1 + $0x350] sm:$0xff]
  %v144 = vld [vmem:[%s1 + $0x358] sm:$0xff]
  %v145 = vld [vmem:[%s1 + $0x360] sm:$0xff]
  %v146 = vld [vmem:[%s1 + $0x368] sm:$0xff]
  %v147 = vld [vmem:[%s1 + $0x370] sm:$0xff]
  %v148 = vld [vmem:[%s1 + $0x378] sm:$0xff]
  %v149 = vld [vmem:[%s1 + $0x380] sm:$0xff]
  %v150 = vld [vmem:[%s1 + $0x388] sm:$0xff]
  %v151 = vld [vmem:[%s1 + $0x390] sm:$0xff]
  %v152 = vld [vmem:[%s1 + $0x398] sm:$0xff]
  %v153 = vld [vmem:[%s1 + $0x3a0] sm:$0xff]
  %v154 = vld [vmem:[%s1 + $0x3a8] sm:$0xff]
  %v155 = vld [vmem:[%s1 + $0x3b0] sm:$0xff]
  %v156 = vld [vmem:[%s1 + $0x3b8] sm:$0xff]
  %v157 = vld [vmem:[%s1 + $0x3c0] sm:$0xff]
  %v158 = vld [vmem:[%s1 + $0x3c8] sm:$0xff]
  %v159 = vld [vmem:[%s1 + $0x3d0] sm:$0xff]
  %v160 = vld [vmem:[%s1 + $0x3d8] sm:$0xff]
  %v161 = vld [vmem:[%s1 + $0x3e0] sm:$0xff]
  %v162 = vld [vmem:[%s1 + $0x3e8] sm:$0xff]
  %v163 = vld [vmem:[%s1 + $0x3f0] sm:$0xff]
  %v164 = vld [vmem:[%s1 + $0x3f8] sm:$0xff]
  %v165 = vld [vmem:[%s2] sm:$0x3]
  %v167 = vlaneseq
  %v168 = vshrl.u32 %v167, 7
  %v169 = vsub.s32 0, %v168
  %v170 = vrot.slane %v165, %v169
  %v171 = vlaneseq
  %v172 = vshrl.u32 %v171, 7
  %v173 = vsub.s32 1, %v172
  %v174 = vrot.slane %v165, %v173
  %v305 = vunpack.c.l.b16 %v37
  %v306 = vunpack.c.h.b16 %v37
  %v307 = vunpack.c.l.b16 %v38
  %v308 = vunpack.c.h.b16 %v38
  %v309 = vunpack.c.l.b16 %v39
  %v310 = vunpack.c.h.b16 %v39
  %v311 = vunpack.c.l.b16 %v40
  %v312 = vunpack.c.h.b16 %v40
  %v313 = vunpack.c.l.b16 %v41
  %v314 = vunpack.c.h.b16 %v41
  %v315 = vunpack.c.l.b16 %v42
  %v316 = vunpack.c.h.b16 %v42
  %v317 = vunpack.c.l.b16 %v43
  %v318 = vunpack.c.h.b16 %v43
  %v319 = vunpack.c.l.b16 %v44
  %v320 = vunpack.c.h.b16 %v44
  %v321 = vunpack.c.l.b16 %v45
  %v322 = vunpack.c.h.b16 %v45
  %v323 = vunpack.c.l.b16 %v46
  %v324 = vunpack.c.h.b16 %v46
  %v325 = vunpack.c.l.b16 %v47
  %v326 = vunpack.c.h.b16 %v47
  %v327 = vunpack.c.l.b16 %v48
  %v328 = vunpack.c.h.b16 %v48
  %v329 = vunpack.c.l.b16 %v49
  %v330 = vunpack.c.h.b16 %v49
  %v331 = vunpack.c.l.b16 %v50
  %v332 = vunpack.c.h.b16 %v50
  %v333 = vunpack.c.l.b16 %v51
  %v334 = vunpack.c.h.b16 %v51
  %v335 = vunpack.c.l.b16 %v52
  %v336 = vunpack.c.h.b16 %v52
  %v337 = vunpack.c.l.b16 %v53
  %v338 = vunpack.c.h.b16 %v53
  %v339 = vunpack.c.l.b16 %v54
  %v340 = vunpack.c.h.b16 %v54
  %v341 = vunpack.c.l.b16 %v55
  %v342 = vunpack.c.h.b16 %v55
  %v343 = vunpack.c.l.b16 %v56
  %v344 = vunpack.c.h.b16 %v56
  %v345 = vunpack.c.l.b16 %v57
  %v346 = vunpack.c.h.b16 %v57
  %v347 = vunpack.c.l.b16 %v58
  %v348 = vunpack.c.h.b16 %v58
  %v349 = vunpack.c.l.b16 %v59
  %v350 = vunpack.c.h.b16 %v59
  %v351 = vunpack.c.l.b16 %v60
  %v352 = vunpack.c.h.b16 %v60
  %v353 = vunpack.c.l.b16 %v61
  %v354 = vunpack.c.h.b16 %v61
  %v355 = vunpack.c.l.b16 %v62
  %v356 = vunpack.c.h.b16 %v62
  %v357 = vunpack.c.l.b16 %v63
  %v358 = vunpack.c.h.b16 %v63
  %v359 = vunpack.c.l.b16 %v64
  %v360 = vunpack.c.h.b16 %v64
  %v361 = vunpack.c.l.b16 %v65
  %v362 = vunpack.c.h.b16 %v65
  %v363 = vunpack.c.l.b16 %v66
  %v364 = vunpack.c.h.b16 %v66
  %v365 = vunpack.c.l.b16 %v67
  %v366 = vunpack.c.h.b16 %v67
  %v367 = vunpack.c.l.b16 %v68
  %v368 = vunpack.c.h.b16 %v68
  %v369 = vunpack.c.l.b16 %v69
  %v370 = vunpack.c.h.b16 %v69
  %v371 = vunpack.c.l.b16 %v70
  %v372 = vunpack.c.h.b16 %v70
  %v373 = vunpack.c.l.b16 %v71
  %v374 = vunpack.c.h.b16 %v71
  %v375 = vunpack.c.l.b16 %v72
  %v376 = vunpack.c.h.b16 %v72
  %v377 = vunpack.c.l.b16 %v73
  %v378 = vunpack.c.h.b16 %v73
  %v379 = vunpack.c.l.b16 %v74
  %v380 = vunpack.c.h.b16 %v74
  %v381 = vunpack.c.l.b16 %v75
  %v382 = vunpack.c.h.b16 %v75
  %v383 = vunpack.c.l.b16 %v76
  %v384 = vunpack.c.h.b16 %v76
  %v385 = vunpack.c.l.b16 %v77
  %v386 = vunpack.c.h.b16 %v77
  %v387 = vunpack.c.l.b16 %v78
  %v388 = vunpack.c.h.b16 %v78
  %v389 = vunpack.c.l.b16 %v79
  %v390 = vunpack.c.h.b16 %v79
  %v391 = vunpack.c.l.b16 %v80
  %v392 = vunpack.c.h.b16 %v80
  %v393 = vunpack.c.l.b16 %v81
  %v394 = vunpack.c.h.b16 %v81
  %v395 = vunpack.c.l.b16 %v82
  %v396 = vunpack.c.h.b16 %v82
  %v397 = vunpack.c.l.b16 %v83
  %v398 = vunpack.c.h.b16 %v83
  %v399 = vunpack.c.l.b16 %v84
  %v400 = vunpack.c.h.b16 %v84
  %v401 = vunpack.c.l.b16 %v85
  %v402 = vunpack.c.h.b16 %v85
  %v403 = vunpack.c.l.b16 %v86
  %v404 = vunpack.c.h.b16 %v86
  %v405 = vunpack.c.l.b16 %v87
  %v406 = vunpack.c.h.b16 %v87
  %v407 = vunpack.c.l.b16 %v88
  %v408 = vunpack.c.h.b16 %v88
  %v409 = vunpack.c.l.b16 %v89
  %v410 = vunpack.c.h.b16 %v89
  %v411 = vunpack.c.l.b16 %v90
  %v412 = vunpack.c.h.b16 %v90
  %v413 = vunpack.c.l.b16 %v91
  %v414 = vunpack.c.h.b16 %v91
  %v415 = vunpack.c.l.b16 %v92
  %v416 = vunpack.c.h.b16 %v92
  %v417 = vunpack.c.l.b16 %v93
  %v418 = vunpack.c.h.b16 %v93
  %v419 = vunpack.c.l.b16 %v94
  %v420 = vunpack.c.h.b16 %v94
  %v421 = vunpack.c.l.b16 %v95
  %v422 = vunpack.c.h.b16 %v95
  %v423 = vunpack.c.l.b16 %v96
  %v424 = vunpack.c.h.b16 %v96
  %v425 = vunpack.c.l.b16 %v97
  %v426 = vunpack.c.h.b16 %v97
  %v427 = vunpack.c.l.b16 %v98
  %v428 = vunpack.c.h.b16 %v98
  %v429 = vunpack.c.l.b16 %v99
  %v430 = vunpack.c.h.b16 %v99
  %v431 = vunpack.c.l.b16 %v100
  %v432 = vunpack.c.h.b16 %v100
  %v433 = vunpack.c.l.b16 %v101
  %v434 = vunpack.c.h.b16 %v101
  %v435 = vunpack.c.l.b16 %v102
  %v436 = vunpack.c.h.b16 %v102
  %v437 = vunpack.c.l.b16 %v103
  %v438 = vunpack.c.h.b16 %v103
  %v439 = vunpack.c.l.b16 %v104
  %v440 = vunpack.c.h.b16 %v104
  %v441 = vunpack.c.l.b16 %v105
  %v442 = vunpack.c.h.b16 %v105
  %v443 = vunpack.c.l.b16 %v106
  %v444 = vunpack.c.h.b16 %v106
  %v445 = vunpack.c.l.b16 %v107
  %v446 = vunpack.c.h.b16 %v107
  %v447 = vunpack.c.l.b16 %v108
  %v448 = vunpack.c.h.b16 %v108
  %v449 = vunpack.c.l.b16 %v109
  %v450 = vunpack.c.h.b16 %v109
  %v451 = vunpack.c.l.b16 %v110
  %v452 = vunpack.c.h.b16 %v110
  %v453 = vunpack.c.l.b16 %v111
  %v454 = vunpack.c.h.b16 %v111
  %v455 = vunpack.c.l.b16 %v112
  %v456 = vunpack.c.h.b16 %v112
  %v457 = vunpack.c.l.b16 %v113
  %v458 = vunpack.c.h.b16 %v113
  %v459 = vunpack.c.l.b16 %v114
  %v460 = vunpack.c.h.b16 %v114
  %v461 = vunpack.c.l.b16 %v115
  %v462 = vunpack.c.h.b16 %v115
  %v463 = vunpack.c.l.b16 %v116
  %v464 = vunpack.c.h.b16 %v116
  %v465 = vunpack.c.l.b16 %v117
  %v466 = vunpack.c.h.b16 %v117
  %v467 = vunpack.c.l.b16 %v118
  %v468 = vunpack.c.h.b16 %v118
  %v469 = vunpack.c.l.b16 %v119
  %v470 = vunpack.c.h.b16 %v119
  %v471 = vunpack.c.l.b16 %v120
  %v472 = vunpack.c.h.b16 %v120
  %v473 = vunpack.c.l.b16 %v121
  %v474 = vunpack.c.h.b16 %v121
  %v475 = vunpack.c.l.b16 %v122
  %v476 = vunpack.c.h.b16 %v122
  %v477 = vunpack.c.l.b16 %v123
  %v478 = vunpack.c.h.b16 %v123
  %v479 = vunpack.c.l.b16 %v124
  %v480 = vunpack.c.h.b16 %v124
  %v481 = vunpack.c.l.b16 %v125
  %v482 = vunpack.c.h.b16 %v125
  %v483 = vunpack.c.l.b16 %v126
  %v484 = vunpack.c.h.b16 %v126
  %v485 = vunpack.c.l.b16 %v127
  %v486 = vunpack.c.h.b16 %v127
  %v487 = vunpack.c.l.b16 %v128
  %v488 = vunpack.c.h.b16 %v128
  %v489 = vunpack.c.l.b16 %v129
  %v490 = vunpack.c.h.b16 %v129
  %v491 = vunpack.c.l.b16 %v130
  %v492 = vunpack.c.h.b16 %v130
  %v493 = vunpack.c.l.b16 %v131
  %v494 = vunpack.c.h.b16 %v131
  %v495 = vunpack.c.l.b16 %v132
  %v496 = vunpack.c.h.b16 %v132
  %v497 = vunpack.c.l.b16 %v133
  %v498 = vunpack.c.h.b16 %v133
  %v499 = vunpack.c.l.b16 %v134
  %v500 = vunpack.c.h.b16 %v134
  %v501 = vunpack.c.l.b16 %v135
  %v502 = vunpack.c.h.b16 %v135
  %v503 = vunpack.c.l.b16 %v136
  %v504 = vunpack.c.h.b16 %v136
  %v505 = vunpack.c.l.b16 %v137
  %v506 = vunpack.c.h.b16 %v137
  %v507 = vunpack.c.l.b16 %v138
  %v508 = vunpack.c.h.b16 %v138
  %v509 = vunpack.c.l.b16 %v139
  %v510 = vunpack.c.h.b16 %v139
  %v511 = vunpack.c.l.b16 %v140
  %v512 = vunpack.c.h.b16 %v140
  %v513 = vunpack.c.l.b16 %v141
  %v514 = vunpack.c.h.b16 %v141
  %v515 = vunpack.c.l.b16 %v142
  %v516 = vunpack.c.h.b16 %v142
  %v517 = vunpack.c.l.b16 %v143
  %v518 = vunpack.c.h.b16 %v143
  %v519 = vunpack.c.l.b16 %v144
  %v520 = vunpack.c.h.b16 %v144
  %v521 = vunpack.c.l.b16 %v145
  %v522 = vunpack.c.h.b16 %v145
  %v523 = vunpack.c.l.b16 %v146
  %v524 = vunpack.c.h.b16 %v146
  %v525 = vunpack.c.l.b16 %v147
  %v526 = vunpack.c.h.b16 %v147
  %v527 = vunpack.c.l.b16 %v148
  %v528 = vunpack.c.h.b16 %v148
  %v529 = vunpack.c.l.b16 %v149
  %v530 = vunpack.c.h.b16 %v149
  %v531 = vunpack.c.l.b16 %v150
  %v532 = vunpack.c.h.b16 %v150
  %v533 = vunpack.c.l.b16 %v151
  %v534 = vunpack.c.h.b16 %v151
  %v535 = vunpack.c.l.b16 %v152
  %v536 = vunpack.c.h.b16 %v152
  %v537 = vunpack.c.l.b16 %v153
  %v538 = vunpack.c.h.b16 %v153
  %v539 = vunpack.c.l.b16 %v154
  %v540 = vunpack.c.h.b16 %v154
  %v541 = vunpack.c.l.b16 %v155
  %v542 = vunpack.c.h.b16 %v155
  %v543 = vunpack.c.l.b16 %v156
  %v544 = vunpack.c.h.b16 %v156
  %v545 = vunpack.c.l.b16 %v157
  %v546 = vunpack.c.h.b16 %v157
  %v547 = vunpack.c.l.b16 %v158
  %v548 = vunpack.c.h.b16 %v158
  %v549 = vunpack.c.l.b16 %v159
  %v550 = vunpack.c.h.b16 %v159
  %v551 = vunpack.c.l.b16 %v160
  %v552 = vunpack.c.h.b16 %v160
  %v553 = vunpack.c.l.b16 %v161
  %v554 = vunpack.c.h.b16 %v161
  %v555 = vunpack.c.l.b16 %v162
  %v556 = vunpack.c.h.b16 %v162
  %v557 = vunpack.c.l.b16 %v163
  %v558 = vunpack.c.h.b16 %v163
  %v559 = vunpack.c.l.b16 %v164
  %v560 = vunpack.c.h.b16 %v164
  %v561 = vpack.c.b16 %v307, %v305
  %v562 = vpack.c.b16 %v308, %v306
  %v563 = vpack.c.b16 %v311, %v309
  %v564 = vpack.c.b16 %v312, %v310
  %v565 = vpack.c.b16 %v315, %v313
  %v566 = vpack.c.b16 %v316, %v314
  %v567 = vpack.c.b16 %v319, %v317
  %v568 = vpack.c.b16 %v320, %v318
  %v569 = vpack.c.b16 %v323, %v321
  %v570 = vpack.c.b16 %v324, %v322
  %v571 = vpack.c.b16 %v327, %v325
  %v572 = vpack.c.b16 %v328, %v326
  %v573 = vpack.c.b16 %v331, %v329
  %v574 = vpack.c.b16 %v332, %v330
  %v575 = vpack.c.b16 %v335, %v333
  %v576 = vpack.c.b16 %v336, %v334
  %v577 = vpack.c.b16 %v339, %v337
  %v578 = vpack.c.b16 %v340, %v338
  %v579 = vpack.c.b16 %v343, %v341
  %v580 = vpack.c.b16 %v344, %v342
  %v581 = vpack.c.b16 %v347, %v345
  %v582 = vpack.c.b16 %v348, %v346
  %v583 = vpack.c.b16 %v351, %v349
  %v584 = vpack.c.b16 %v352, %v350
  %v585 = vpack.c.b16 %v355, %v353
  %v586 = vpack.c.b16 %v356, %v354
  %v587 = vpack.c.b16 %v359, %v357
  %v588 = vpack.c.b16 %v360, %v358
  %v589 = vpack.c.b16 %v363, %v361
  %v590 = vpack.c.b16 %v364, %v362
  %v591 = vpack.c.b16 %v367, %v365
  %v592 = vpack.c.b16 %v368, %v366
  %v593 = vpack.c.b16 %v371, %v369
  %v594 = vpack.c.b16 %v372, %v370
  %v595 = vpack.c.b16 %v375, %v373
  %v596 = vpack.c.b16 %v376, %v374
  %v597 = vpack.c.b16 %v379, %v377
  %v598 = vpack.c.b16 %v380, %v378
  %v599 = vpack.c.b16 %v383, %v381
  %v600 = vpack.c.b16 %v384, %v382
  %v601 = vpack.c.b16 %v387, %v385
  %v602 = vpack.c.b16 %v388, %v386
  %v603 = vpack.c.b16 %v391, %v389
  %v604 = vpack.c.b16 %v392, %v390
  %v605 = vpack.c.b16 %v395, %v393
  %v606 = vpack.c.b16 %v396, %v394
  %v607 = vpack.c.b16 %v399, %v397
  %v608 = vpack.c.b16 %v400, %v398
  %v609 = vpack.c.b16 %v403, %v401
  %v610 = vpack.c.b16 %v404, %v402
  %v611 = vpack.c.b16 %v407, %v405
  %v612 = vpack.c.b16 %v408, %v406
  %v613 = vpack.c.b16 %v411, %v409
  %v614 = vpack.c.b16 %v412, %v410
  %v615 = vpack.c.b16 %v415, %v413
  %v616 = vpack.c.b16 %v416, %v414
  %v617 = vpack.c.b16 %v419, %v417
  %v618 = vpack.c.b16 %v420, %v418
  %v619 = vpack.c.b16 %v423, %v421
  %v620 = vpack.c.b16 %v424, %v422
  %v621 = vpack.c.b16 %v427, %v425
  %v622 = vpack.c.b16 %v428, %v426
  %v623 = vpack.c.b16 %v431, %v429
  %v624 = vpack.c.b16 %v432, %v430
  %v625 = vpack.c.b16 %v435, %v433
  %v626 = vpack.c.b16 %v436, %v434
  %v627 = vpack.c.b16 %v439, %v437
  %v628 = vpack.c.b16 %v440, %v438
  %v629 = vpack.c.b16 %v443, %v441
  %v630 = vpack.c.b16 %v444, %v442
  %v631 = vpack.c.b16 %v447, %v445
  %v632 = vpack.c.b16 %v448, %v446
  %v633 = vpack.c.b16 %v451, %v449
  %v634 = vpack.c.b16 %v452, %v450
  %v635 = vpack.c.b16 %v455, %v453
  %v636 = vpack.c.b16 %v456, %v454
  %v637 = vpack.c.b16 %v459, %v457
  %v638 = vpack.c.b16 %v460, %v458
  %v639 = vpack.c.b16 %v463, %v461
  %v640 = vpack.c.b16 %v464, %v462
  %v641 = vpack.c.b16 %v467, %v465
  %v642 = vpack.c.b16 %v468, %v466
  %v643 = vpack.c.b16 %v471, %v469
  %v644 = vpack.c.b16 %v472, %v470
  %v645 = vpack.c.b16 %v475, %v473
  %v646 = vpack.c.b16 %v476, %v474
  %v647 = vpack.c.b16 %v479, %v477
  %v648 = vpack.c.b16 %v480, %v478
  %v649 = vpack.c.b16 %v483, %v481
  %v650 = vpack.c.b16 %v484, %v482
  %v651 = vpack.c.b16 %v487, %v485
  %v652 = vpack.c.b16 %v488, %v486
  %v653 = vpack.c.b16 %v491, %v489
  %v654 = vpack.c.b16 %v492, %v490
  %v655 = vpack.c.b16 %v495, %v493
  %v656 = vpack.c.b16 %v496, %v494
  %v657 = vpack.c.b16 %v499, %v497
  %v658 = vpack.c.b16 %v500, %v498
  %v659 = vpack.c.b16 %v503, %v501
  %v660 = vpack.c.b16 %v504, %v502
  %v661 = vpack.c.b16 %v507, %v505
  %v662 = vpack.c.b16 %v508, %v506
  %v663 = vpack.c.b16 %v511, %v509
  %v664 = vpack.c.b16 %v512, %v510
  %v665 = vpack.c.b16 %v515, %v513
  %v666 = vpack.c.b16 %v516, %v514
  %v667 = vpack.c.b16 %v519, %v517
  %v668 = vpack.c.b16 %v520, %v518
  %v669 = vpack.c.b16 %v523, %v521
  %v670 = vpack.c.b16 %v524, %v522
  %v671 = vpack.c.b16 %v527, %v525
  %v672 = vpack.c.b16 %v528, %v526
  %v673 = vpack.c.b16 %v531, %v529
  %v674 = vpack.c.b16 %v532, %v530
  %v675 = vpack.c.b16 %v535, %v533
  %v676 = vpack.c.b16 %v536, %v534
  %v677 = vpack.c.b16 %v539, %v537
  %v678 = vpack.c.b16 %v540, %v538
  %v679 = vpack.c.b16 %v543, %v541
  %v680 = vpack.c.b16 %v544, %v542
  %v681 = vpack.c.b16 %v547, %v545
  %v682 = vpack.c.b16 %v548, %v546
  %v683 = vpack.c.b16 %v551, %v549
  %v684 = vpack.c.b16 %v552, %v550
  %v685 = vpack.c.b16 %v555, %v553
  %v686 = vpack.c.b16 %v556, %v554
  %v687 = vpack.c.b16 %v559, %v557
  %v688 = vpack.c.b16 %v560, %v558
  %817 = vmatprep.subr.bf16.mxu0 %v562
  %818 = vmatpush1.bf16.msra.mxu0 %v561
  %819 = vmatprep.subr.bf16.mxu0 %v564
  %820 = vmatpush1.bf16.msra.mxu0 %v563
  %821 = vmatprep.subr.bf16.mxu0 %v566
  %822 = vmatpush1.bf16.msra.mxu0 %v565
  %823 = vmatprep.subr.bf16.mxu0 %v568
  %824 = vmatpush1.bf16.msra.mxu0 %v567
  %825 = vmatprep.subr.bf16.mxu0 %v570
  %826 = vmatpush1.bf16.msra.mxu0 %v569
  %827 = vmatprep.subr.bf16.mxu0 %v572
  %828 = vmatpush1.bf16.msra.mxu0 %v571
  %829 = vmatprep.subr.bf16.mxu0 %v574
  %830 = vmatpush1.bf16.msra.mxu0 %v573
  %831 = vmatprep.subr.bf16.mxu0 %v576
  %832 = vmatpush1.bf16.msra.mxu0 %v575
  %833 = vmatprep.subr.bf16.mxu0 %v578
  %834 = vmatpush1.bf16.msra.mxu0 %v577
  %835 = vmatprep.subr.bf16.mxu0 %v580
  %836 = vmatpush1.bf16.msra.mxu0 %v579
  %837 = vmatprep.subr.bf16.mxu0 %v582
  %838 = vmatpush1.bf16.msra.mxu0 %v581
  %839 = vmatprep.subr.bf16.mxu0 %v584
  %840 = vmatpush1.bf16.msra.mxu0 %v583
  %841 = vmatprep.subr.bf16.mxu0 %v586
  %842 = vmatpush1.bf16.msra.mxu0 %v585
  %843 = vmatprep.subr.bf16.mxu0 %v588
  %844 = vmatpush1.bf16.msra.mxu0 %v587
  %845 = vmatprep.subr.bf16.mxu0 %v590
  %846 = vmatpush1.bf16.msra.mxu0 %v589
  %847 = vmatprep.subr.bf16.mxu0 %v592
  %848 = vmatpush1.bf16.msra.mxu0 %v591
  %849 = vmatprep.mubr.bf16.mxu0 %v30
  %850 = vmatmul.mubr.bf16.gmra.mrb[0].mxu0 %v29
  %v851 = vpop.f32.mrb[0].mxu0
  %v852 = vadd.f32 %v170, %v851
  %v853 = vpop.f32.mrb[0].mxu0
  %v854 = vadd.f32 %v174, %v853
  %v855 = vpop.f32.mrb[0].mxu0
  %v856 = vpop.f32.mrb[0].mxu0
  %857 = vdwg.mxu0
  %858 = vmatprep.subr.bf16.mxu0 %v594
  %859 = vmatpush1.bf16.msra.mxu0 %v593
  %860 = vmatprep.subr.bf16.mxu0 %v596
  %861 = vmatpush1.bf16.msra.mxu0 %v595
  %862 = vmatprep.subr.bf16.mxu0 %v598
  %863 = vmatpush1.bf16.msra.mxu0 %v597
  %864 = vmatprep.subr.bf16.mxu0 %v600
  %865 = vmatpush1.bf16.msra.mxu0 %v599
  %866 = vmatprep.subr.bf16.mxu0 %v602
  %867 = vmatpush1.bf16.msra.mxu0 %v601
  %868 = vmatprep.subr.bf16.mxu0 %v604
  %869 = vmatpush1.bf16.msra.mxu0 %v603
  %870 = vmatprep.subr.bf16.mxu0 %v606
  %871 = vmatpush1.bf16.msra.mxu0 %v605
  %872 = vmatprep.subr.bf16.mxu0 %v608
  %873 = vmatpush1.bf16.msra.mxu0 %v607
  %874 = vmatprep.subr.bf16.mxu0 %v610
  %875 = vmatpush1.bf16.msra.mxu0 %v609
  %876 = vmatprep.subr.bf16.mxu0 %v612
  %877 = vmatpush1.bf16.msra.mxu0 %v611
  %878 = vmatprep.subr.bf16.mxu0 %v614
  %879 = vmatpush1.bf16.msra.mxu0 %v613
  %880 = vmatprep.subr.bf16.mxu0 %v616
  %881 = vmatpush1.bf16.msra.mxu0 %v615
  %882 = vmatprep.subr.bf16.mxu0 %v618
  %883 = vmatpush1.bf16.msra.mxu0 %v617
  %884 = vmatprep.subr.bf16.mxu0 %v620
  %885 = vmatpush1.bf16.msra.mxu0 %v619
  %886 = vmatprep.subr.bf16.mxu0 %v622
  %887 = vmatpush1.bf16.msra.mxu0 %v621
  %888 = vmatprep.subr.bf16.mxu0 %v624
  %889 = vmatpush1.bf16.msra.mxu0 %v623
  %890 = vmatprep.mubr.bf16.mxu0 %v32
  %891 = vmatmul.mubr.bf16.gmra.mrb[0].mxu0 %v31
  %v892 = vpop.f32.mrb[0].mxu0
  %v893 = vadd.f32 %v852, %v892
  %v894 = vpop.f32.mrb[0].mxu0
  %v895 = vadd.f32 %v854, %v894
  %v896 = vpop.f32.mrb[0].mxu0
  %v897 = vpop.f32.mrb[0].mxu0
  %898 = vdwg.mxu0
  %899 = vmatprep.subr.bf16.mxu0 %v626
  %900 = vmatpush1.bf16.msra.mxu0 %v625
  %901 = vmatprep.subr.bf16.mxu0 %v628
  %902 = vmatpush1.bf16.msra.mxu0 %v627
  %903 = vmatprep.subr.bf16.mxu0 %v630
  %904 = vmatpush1.bf16.msra.mxu0 %v629
  %905 = vmatprep.subr.bf16.mxu0 %v632
  %906 = vmatpush1.bf16.msra.mxu0 %v631
  %907 = vmatprep.subr.bf16.mxu0 %v634
  %908 = vmatpush1.bf16.msra.mxu0 %v633
  %909 = vmatprep.subr.bf16.mxu0 %v636
  %910 = vmatpush1.bf16.msra.mxu0 %v635
  %911 = vmatprep.subr.bf16.mxu0 %v638
  %912 = vmatpush1.bf16.msra.mxu0 %v637
  %913 = vmatprep.subr.bf16.mxu0 %v640
  %914 = vmatpush1.bf16.msra.mxu0 %v639
  %915 = vmatprep.subr.bf16.mxu0 %v642
  %916 = vmatpush1.bf16.msra.mxu0 %v641
  %917 = vmatprep.subr.bf16.mxu0 %v644
  %918 = vmatpush1.bf16.msra.mxu0 %v643
  %919 = vmatprep.subr.bf16.mxu0 %v646
  %920 = vmatpush1.bf16.msra.mxu0 %v645
  %921 = vmatprep.subr.bf16.mxu0 %v648
  %922 = vmatpush1.bf16.msra.mxu0 %v647
  %923 = vmatprep.subr.bf16.mxu0 %v650
  %924 = vmatpush1.bf16.msra.mxu0 %v649
  %925 = vmatprep.subr.bf16.mxu0 %v652
  %926 = vmatpush1.bf16.msra.mxu0 %v651
  %927 = vmatprep.subr.bf16.mxu0 %v654
  %928 = vmatpush1.bf16.msra.mxu0 %v653
  %929 = vmatprep.subr.bf16.mxu0 %v656
  %930 = vmatpush1.bf16.msra.mxu0 %v655
  %931 = vmatprep.mubr.bf16.mxu0 %v34
  %932 = vmatmul.mubr.bf16.gmra.mrb[0].mxu0 %v33
  %v933 = vpop.f32.mrb[0].mxu0
  %v934 = vadd.f32 %v893, %v933
  %v935 = vpop.f32.mrb[0].mxu0
  %v936 = vadd.f32 %v895, %v935
  %v937 = vpop.f32.mrb[0].mxu0
  %v938 = vpop.f32.mrb[0].mxu0
  %939 = vdwg.mxu0
  %940 = vmatprep.subr.bf16.mxu0 %v658
  %941 = vmatpush1.bf16.msra.mxu0 %v657
  %942 = vmatprep.subr.bf16.mxu0 %v660
  %943 = vmatpush1.bf16.msra.mxu0 %v659
  %944 = vmatprep.subr.bf16.mxu0 %v662
  %945 = vmatpush1.bf16.msra.mxu0 %v661
  %946 = vmatprep.subr.bf16.mxu0 %v664
  %947 = vmatpush1.bf16.msra.mxu0 %v663
  %948 = vmatprep.subr.bf16.mxu0 %v666
  %949 = vmatpush1.bf16.msra.mxu0 %v665
  %950 = vmatprep.subr.bf16.mxu0 %v668
  %951 = vmatpush1.bf16.msra.mxu0 %v667
  %952 = vmatprep.subr.bf16.mxu0 %v670
  %953 = vmatpush1.bf16.msra.mxu0 %v669
  %954 = vmatprep.subr.bf16.mxu0 %v672
  %955 = vmatpush1.bf16.msra.mxu0 %v671
  %956 = vmatprep.subr.bf16.mxu0 %v674
  %957 = vmatpush1.bf16.msra.mxu0 %v673
  %958 = vmatprep.subr.bf16.mxu0 %v676
  %959 = vmatpush1.bf16.msra.mxu0 %v675
  %960 = vmatprep.subr.bf16.mxu0 %v678
  %961 = vmatpush1.bf16.msra.mxu0 %v677
  %962 = vmatprep.subr.bf16.mxu0 %v680
  %963 = vmatpush1.bf16.msra.mxu0 %v679
  %964 = vmatprep.subr.bf16.mxu0 %v682
  %965 = vmatpush1.bf16.msra.mxu0 %v681
  %966 = vmatprep.subr.bf16.mxu0 %v684
  %967 = vmatpush1.bf16.msra.mxu0 %v683
  %968 = vmatprep.subr.bf16.mxu0 %v686
  %969 = vmatpush1.bf16.msra.mxu0 %v685
  %970 = vmatprep.subr.bf16.mxu0 %v688
  %971 = vmatpush1.bf16.msra.mxu0 %v687
  %972 = vmatprep.mubr.bf16.mxu0 %v36
  %973 = vmatmul.mubr.bf16.gmra.mrb[0].mxu0 %v35
  %v974 = vpop.f32.mrb[0].mxu0
  %v975 = vadd.f32 %v934, %v974
  %v976 = vpop.f32.mrb[0].mxu0
  %v977 = vadd.f32 %v936, %v976
  %v978 = vpop.f32.mrb[0].mxu0
  %v979 = vpop.f32.mrb[0].mxu0
  %980 = vdwg.mxu0
  %v981 = vmax.f32 %v975, 0.0
  %v982 = vmax.f32 %v977, 0.0
  %v983 = vld [vmem:[%s3] sm:$0x3]
  %v985 = vlaneseq
  %v986 = vshrl.u32 %v985, 7
  %v987 = vsub.s32 0, %v986
  %v988 = vrot.slane %v983, %v987
  %v989 = vlaneseq
  %v990 = vshrl.u32 %v989, 7
  %v991 = vsub.s32 1, %v990
  %v992 = vrot.slane %v983, %v991
  %v995 = vmul.f32 %v981, %v988
  %v996 = vmul.f32 %v982, %v992
  %v997 = vadd.f32 %v995, %v996
  %998 = vadd.xlane.f32.xlu0 %v997
  %v999 = vpop.xlane.xlu0 %998
  %s1000 = sld [smem:[#allocation2]]
  %v1001 = vstv %s1000
  %v1002 = vadd.f32 %v999, %v1001
  %vm1003 = vcmask 7168
  %1004 = vst.msk [vmem:[%s5] sm:$0xff] %vm1003, %v1002
  // Predicated region
  $region22: #{feed_forward_nn.1} parent=0 // pred_check
    _
  $region23: #{feed_forward_nn.1} parent=0 // pred_check_branch
    %1006 = sbr.rel (0) target = $region25
  $region24: #{feed_forward_nn.1} parent=0 // pred_region
    _
  $region25: #{feed_forward_nn.1} parent=0 // pred_fallthru
    _
  // Predicated region
  $region26: #{feed_forward_nn.1} parent=0 // pred_check
    _
  $region27: #{feed_forward_nn.1} parent=0 // pred_check_branch
    %1008 = sbr.rel (0) target = $region29
  $region28: #{feed_forward_nn.1} parent=0 // pred_region
    _
  $region29: #{feed_forward_nn.1} parent=0 // pred_fallthru
    _

</llo_original>
